<compile_context>
chip_gen: v5e
topology: v5e:2x2
jax: 0.10.0
libtpu: 0.0.40
codegen_flags: <defaults>
</compile_context>

<pallas_src>
import functools

import jax
import jax.numpy as jnp
from jax.experimental import pallas as pl
from jax.experimental.pallas import tpu as pltpu


# --------------------------------------------------------------------------- #
# Fused kernel: the whole MLP in one invocation (everything VMEM-resident).
# --------------------------------------------------------------------------- #
def _fused_mlp_kernel(*refs, n_hidden, eps):
    """refs = [x, (wt_i, gamma_i, beta_i) * n_hidden, wt_last, b_last, out]."""
    x_ref = refs[0]
    o_ref = refs[-1]
    h = x_ref[...]
    idx = 1
    for _ in range(n_hidden):
        wt_ref, g_ref, beta_ref = refs[idx], refs[idx + 1], refs[idx + 2]
        idx += 3
        w = wt_ref[...]                                     # (K, N) lane-dense RHS
        # Linear (no bias: BN mean-subtraction cancels it exactly).
        y = jnp.dot(h.astype(w.dtype), w, preferred_element_type=jnp.float32)
        # BatchNorm1d training-mode forward: batch mean, biased batch variance.
        mean = jnp.mean(y, axis=0, keepdims=True)
        var = jnp.mean(jnp.square(y - mean), axis=0, keepdims=True)
        scale = g_ref[...] * jax.lax.rsqrt(var + jnp.float32(eps))
        y = (y - mean) * scale + beta_ref[...]
        # ReLU
        h = jnp.maximum(y, 0.0)
    wt_ref, b_ref = refs[idx], refs[idx + 1]
    w = wt_ref[...]
    y = jnp.dot(h.astype(w.dtype), w, preferred_element_type=jnp.float32)
    o_ref[...] = (y + b_ref[...]).astype(o_ref.dtype)


# --------------------------------------------------------------------------- #
# Param preparation (one-time, outside the forward pass)
# --------------------------------------------------------------------------- #
def prepare_params(params_torch_layout, *, weight_dtype=jnp.float32):
    """One-time layout prep: PyTorch (out, in) weights -> (in, out).

    Hidden layers keep only {wt, gamma, beta}: the Linear bias is dropped because
    BatchNorm's mean subtraction cancels it.  The final layer keeps {wt, b}.
    """
    prepared = []
    for p in params_torch_layout[:-1]:
        prepared.append(dict(
            wt=jnp.asarray(p["w"]).T.astype(weight_dtype),
            gamma=jnp.asarray(p["gamma"], jnp.float32).reshape(1, -1),
            beta=jnp.asarray(p["beta"], jnp.float32).reshape(1, -1),
        ))
    last = params_torch_layout[-1]
    prepared.append(dict(
        wt=jnp.asarray(last["w"]).T.astype(weight_dtype),
        b=jnp.asarray(last["b"], jnp.float32).reshape(1, -1),
    ))
    return prepared


# --------------------------------------------------------------------------- #
# Forward wrapper
# --------------------------------------------------------------------------- #
def mlp_g_forward(x, prepared_params, *, eps=1e-5):
    """Pallas implementation of MLP_G.forward (single fused kernel)."""
    B = x.shape[0]
    n_hidden = len(prepared_params) - 1
    noutput = prepared_params[-1]["wt"].shape[1]

    inputs = [x]
    for p in prepared_params[:-1]:
        inputs += [p["wt"], p["gamma"], p["beta"]]
    inputs += [prepared_params[-1]["wt"], prepared_params[-1]["b"]]

    # Everything (weights + activations) must co-reside in VMEM for the fused path.
    act_bytes = sum(4 * B * p["wt"].shape[1] for p in prepared_params)
    in_bytes = sum(a.size * a.dtype.itemsize for a in inputs)
    if in_bytes + 2 * act_bytes > 32 * 1024 * 1024:  # conservative: v7x scoped default
        # TODO(synk): add a K/N-tiled multi-pallas_call fallback for huge layers.
        raise NotImplementedError("MLP too large for the fused single-kernel path")

    kernel = functools.partial(_fused_mlp_kernel, n_hidden=n_hidden, eps=eps)
    return pl.pallas_call(
        kernel,
        out_shape=jax.ShapeDtypeStruct((B, noutput), jnp.float32),
        in_specs=[pl.BlockSpec(memory_space=pltpu.MemorySpace.VMEM)
                  for _ in inputs],
        out_specs=pl.BlockSpec(memory_space=pltpu.MemorySpace.VMEM),
    )(*inputs)


# --------------------------------------------------------------------------- #
# Pure-JAX reference (mirrors the PyTorch module in training mode, bias included)
# --------------------------------------------------------------------------- #
def _mlp_g_ref(x, params, eps=1e-5):
    h = x
    for p in params[:-1]:
        y = h @ p["w"].T + p["b"]
        mean = jnp.mean(y, axis=0)
        var = jnp.mean(jnp.square(y - mean), axis=0)        # biased, as in BN forward
        y = (y - mean) / jnp.sqrt(var + eps) * p["gamma"] + p["beta"]
        h = jnp.maximum(y, 0.0)
    p = params[-1]
    return h @ p["w"].T + p["b"]


# --------------------------------------------------------------------------- #
# Demo / self-check
# --------------------------------------------------------------------------- #
if __name__ == "__main__":
    key = jax.random.PRNGKey(0)

    # MLP_G(ninput=32, noutput=32, layers="64-64"), batch=8.
    ninput, noutput, layers_spec, batch = 32, 32, "64-64", 8
    init_std = 0.02
    layer_sizes = [ninput] + [int(s) for s in layers_spec.split("-")]

    # Params in PyTorch layout, initialized like MLP_G.init_weights():
    # Linear/BN weights ~ N(0, 0.02^2), all biases (and BN beta) zero.
    params = []
    for i in range(len(layer_sizes) - 1):
        key, kw, kg = jax.random.split(key, 3)
        params.append(dict(
            w=init_std * jax.random.normal(
                kw, (layer_sizes[i + 1], layer_sizes[i]), jnp.float32),
            b=jnp.zeros((layer_sizes[i + 1],), jnp.float32),
            gamma=init_std * jax.random.normal(
                kg, (layer_sizes[i + 1],), jnp.float32),
            beta=jnp.zeros((layer_sizes[i + 1],), jnp.float32),
        ))
    key, kw = jax.random.split(key)
    params.append(dict(
        w=init_std * jax.random.normal(kw, (noutput, layer_sizes[-1]), jnp.float32),
        b=jnp.zeros((noutput,), jnp.float32),
    ))

    key, kx = jax.random.split(key)
    x = jax.random.normal(kx, (batch, ninput), dtype=jnp.float32)

    prepared = prepare_params(params)          # one-time (in, out) weight layout
    out = mlp_g_forward(x, prepared)
    out = jax.block_until_ready(out)

    ref = _mlp_g_ref(x, params)
    assert out.shape == (batch, noutput), (out.shape, (batch, noutput))
    assert jnp.allclose(out, ref, rtol=1e-3, atol=1e-5), (out, ref)
    print("KERNEL_OK")
</pallas_src>

<mosaic_0001>
module attributes {stable_mosaic.version = 11 : i64} {
  func.func @_fused_mlp_kernel(%arg0: memref<8x32xf32, #tpu.memory_space<vmem>>, %arg1: memref<32x64xf32, #tpu.memory_space<vmem>>, %arg2: memref<1x64xf32, #tpu.memory_space<vmem>>, %arg3: memref<1x64xf32, #tpu.memory_space<vmem>>, %arg4: memref<64x64xf32, #tpu.memory_space<vmem>>, %arg5: memref<1x64xf32, #tpu.memory_space<vmem>>, %arg6: memref<1x64xf32, #tpu.memory_space<vmem>>, %arg7: memref<64x32xf32, #tpu.memory_space<vmem>>, %arg8: memref<1x32xf32, #tpu.memory_space<vmem>>, %arg9: memref<8x32xf32, #tpu.memory_space<vmem>>) attributes {dimension_semantics = [], scalar_prefetch = 0 : i64, scratch_operands = 0 : i64, tpu.core_type = #tpu.core_type<tc>} {
    %c0 = arith.constant 0 : index
    %c0_0 = arith.constant 0 : index
    %0 = vector.load %arg0[%c0, %c0_0] : memref<8x32xf32, #tpu.memory_space<vmem>>, vector<8x32xf32>
    %c0_1 = arith.constant 0 : index
    %c0_2 = arith.constant 0 : index
    %1 = vector.load %arg1[%c0_1, %c0_2] : memref<32x64xf32, #tpu.memory_space<vmem>>, vector<32x64xf32>
    %cst = arith.constant dense<0.000000e+00> : vector<8x64xf32>
    %2 = tpu.matmul %0, %1, %cst {dimension_numbers = #tpu.dot_dimension_numbers<[1], [0], [0], [1], [0, 0, 1, 1], [], []>} : vector<8x32xf32>, vector<32x64xf32>, vector<8x64xf32> -> vector<8x64xf32>
    %cst_3 = arith.constant dense<0.000000e+00> : vector<64xf32>
    %3 = vector.multi_reduction <add>, %2, %cst_3 [0] : vector<8x64xf32> to vector<64xf32>
    %4 = vector.shape_cast %3 : vector<64xf32> to vector<1x64xf32>
    %cst_4 = arith.constant 8.000000e+00 : f32
    %5 = vector.broadcast %cst_4 : f32 to vector<1x64xf32>
    %6 = arith.divf %4, %5 : vector<1x64xf32>
    %7 = vector.broadcast %6 : vector<1x64xf32> to vector<8x64xf32>
    %8 = arith.subf %2, %7 : vector<8x64xf32>
    %9 = arith.mulf %8, %8 : vector<8x64xf32>
    %cst_5 = arith.constant dense<0.000000e+00> : vector<64xf32>
    %10 = vector.multi_reduction <add>, %9, %cst_5 [0] : vector<8x64xf32> to vector<64xf32>
    %11 = vector.shape_cast %10 : vector<64xf32> to vector<1x64xf32>
    %cst_6 = arith.constant 8.000000e+00 : f32
    %12 = vector.broadcast %cst_6 : f32 to vector<1x64xf32>
    %13 = arith.divf %11, %12 : vector<1x64xf32>
    %c0_7 = arith.constant 0 : index
    %c0_8 = arith.constant 0 : index
    %14 = vector.load %arg2[%c0_7, %c0_8] : memref<1x64xf32, #tpu.memory_space<vmem>>, vector<1x64xf32>
    %cst_9 = arith.constant 9.99999974E-6 : f32
    %15 = vector.broadcast %cst_9 : f32 to vector<1x64xf32>
    %16 = arith.addf %13, %15 : vector<1x64xf32>
    %17 = math.rsqrt %16 : vector<1x64xf32>
    %18 = arith.mulf %14, %17 : vector<1x64xf32>
    %19 = vector.broadcast %6 : vector<1x64xf32> to vector<8x64xf32>
    %20 = arith.subf %2, %19 : vector<8x64xf32>
    %21 = vector.broadcast %18 : vector<1x64xf32> to vector<8x64xf32>
    %22 = arith.mulf %20, %21 : vector<8x64xf32>
    %c0_10 = arith.constant 0 : index
    %c0_11 = arith.constant 0 : index
    %23 = vector.load %arg3[%c0_10, %c0_11] : memref<1x64xf32, #tpu.memory_space<vmem>>, vector<1x64xf32>
    %24 = vector.broadcast %23 : vector<1x64xf32> to vector<8x64xf32>
    %25 = arith.addf %22, %24 : vector<8x64xf32>
    %cst_12 = arith.constant 0.000000e+00 : f32
    %26 = vector.broadcast %cst_12 : f32 to vector<8x64xf32>
    %27 = arith.maximumf %25, %26 : vector<8x64xf32>
    %c0_13 = arith.constant 0 : index
    %c0_14 = arith.constant 0 : index
    %28 = vector.load %arg4[%c0_13, %c0_14] : memref<64x64xf32, #tpu.memory_space<vmem>>, vector<64x64xf32>
    %cst_15 = arith.constant dense<0.000000e+00> : vector<8x64xf32>
    %29 = tpu.matmul %27, %28, %cst_15 {dimension_numbers = #tpu.dot_dimension_numbers<[1], [0], [0], [1], [0, 0, 1, 1], [], []>} : vector<8x64xf32>, vector<64x64xf32>, vector<8x64xf32> -> vector<8x64xf32>
    %cst_16 = arith.constant dense<0.000000e+00> : vector<64xf32>
    %30 = vector.multi_reduction <add>, %29, %cst_16 [0] : vector<8x64xf32> to vector<64xf32>
    %31 = vector.shape_cast %30 : vector<64xf32> to vector<1x64xf32>
    %cst_17 = arith.constant 8.000000e+00 : f32
    %32 = vector.broadcast %cst_17 : f32 to vector<1x64xf32>
    %33 = arith.divf %31, %32 : vector<1x64xf32>
    %34 = vector.broadcast %33 : vector<1x64xf32> to vector<8x64xf32>
    %35 = arith.subf %29, %34 : vector<8x64xf32>
    %36 = arith.mulf %35, %35 : vector<8x64xf32>
    %cst_18 = arith.constant dense<0.000000e+00> : vector<64xf32>
    %37 = vector.multi_reduction <add>, %36, %cst_18 [0] : vector<8x64xf32> to vector<64xf32>
    %38 = vector.shape_cast %37 : vector<64xf32> to vector<1x64xf32>
    %cst_19 = arith.constant 8.000000e+00 : f32
    %39 = vector.broadcast %cst_19 : f32 to vector<1x64xf32>
    %40 = arith.divf %38, %39 : vector<1x64xf32>
    %c0_20 = arith.constant 0 : index
    %c0_21 = arith.constant 0 : index
    %41 = vector.load %arg5[%c0_20, %c0_21] : memref<1x64xf32, #tpu.memory_space<vmem>>, vector<1x64xf32>
    %cst_22 = arith.constant 9.99999974E-6 : f32
    %42 = vector.broadcast %cst_22 : f32 to vector<1x64xf32>
    %43 = arith.addf %40, %42 : vector<1x64xf32>
    %44 = math.rsqrt %43 : vector<1x64xf32>
    %45 = arith.mulf %41, %44 : vector<1x64xf32>
    %46 = vector.broadcast %33 : vector<1x64xf32> to vector<8x64xf32>
    %47 = arith.subf %29, %46 : vector<8x64xf32>
    %48 = vector.broadcast %45 : vector<1x64xf32> to vector<8x64xf32>
    %49 = arith.mulf %47, %48 : vector<8x64xf32>
    %c0_23 = arith.constant 0 : index
    %c0_24 = arith.constant 0 : index
    %50 = vector.load %arg6[%c0_23, %c0_24] : memref<1x64xf32, #tpu.memory_space<vmem>>, vector<1x64xf32>
    %51 = vector.broadcast %50 : vector<1x64xf32> to vector<8x64xf32>
    %52 = arith.addf %49, %51 : vector<8x64xf32>
    %cst_25 = arith.constant 0.000000e+00 : f32
    %53 = vector.broadcast %cst_25 : f32 to vector<8x64xf32>
    %54 = arith.maximumf %52, %53 : vector<8x64xf32>
    %c0_26 = arith.constant 0 : index
    %c0_27 = arith.constant 0 : index
    %55 = vector.load %arg7[%c0_26, %c0_27] : memref<64x32xf32, #tpu.memory_space<vmem>>, vector<64x32xf32>
    %cst_28 = arith.constant dense<0.000000e+00> : vector<8x32xf32>
    %56 = tpu.matmul %54, %55, %cst_28 {dimension_numbers = #tpu.dot_dimension_numbers<[1], [0], [0], [1], [0, 0, 1, 1], [], []>} : vector<8x64xf32>, vector<64x32xf32>, vector<8x32xf32> -> vector<8x32xf32>
    %c0_29 = arith.constant 0 : index
    %c0_30 = arith.constant 0 : index
    %57 = vector.load %arg8[%c0_29, %c0_30] : memref<1x32xf32, #tpu.memory_space<vmem>>, vector<1x32xf32>
    %58 = vector.broadcast %57 : vector<1x32xf32> to vector<8x32xf32>
    %59 = arith.addf %56, %58 : vector<8x32xf32>
    %c0_31 = arith.constant 0 : index
    %c0_32 = arith.constant 0 : index
    %60 = vector.load %arg9[%c0_31, %c0_32] : memref<8x32xf32, #tpu.memory_space<vmem>>, vector<8x32xf32>
    tpu.vector_store %arg9[%c0_31, %c0_32], %59 {strides = array<i32>} : memref<8x32xf32, #tpu.memory_space<vmem>>, vector<8x32xf32>,
    return
  }
}

</mosaic_0001>

<llo_original>
// kernel: tpu_custom_call.1
$region0: #{tpu_custom_call.1}
  #allocation0 [shape = 'u32[]', space=smem, size = 0x4, offset = 0x4, fixed_abs, tag = 'smem constant byte address 0x4 - core index']
  #allocation1 [shape = 'u32[72,128]{1,0:T(1,128)}', space=vmem, size = 0x9000, scoped, tag = 'internal scratch']
  %s0 = inlined_call_operand.hbm [shape: f32[8,32], index: 0, kind: input, shape index: {}]
  %s1 = inlined_call_operand.vmem [shape: f32[32,64], index: 1, kind: input, shape index: {}]
  %s2 = inlined_call_operand.vmem [shape: f32[1,64], index: 2, kind: input, shape index: {}]
  %s3 = inlined_call_operand.vmem [shape: f32[1,64], index: 3, kind: input, shape index: {}]
  %s4 = inlined_call_operand.vmem [shape: f32[64,64], index: 4, kind: input, shape index: {}]
  %s5 = inlined_call_operand.vmem [shape: f32[1,64], index: 5, kind: input, shape index: {}]
  %s6 = inlined_call_operand.vmem [shape: f32[1,64], index: 6, kind: input, shape index: {}]
  %s7 = inlined_call_operand.vmem [shape: f32[64,32], index: 7, kind: input, shape index: {}]
  %s8 = inlined_call_operand.vmem [shape: f32[1,32], index: 8, kind: input, shape index: {}]
  %s9 = inlined_call_operand.hbm [shape: f32[8,32], index: 9, kind: output, shape index: {}]
  %s10 = sld [smem:[#allocation0]]
  $region50: #{tpu_custom_call.1} parent=0
    _
  %s12 = ssub.s32 1, %s10
  %s13 = scalar_select 0, %s12, %s10
  $region1: #{tpu_custom_call.1} parent=0
    #allocation2 [shape = 'u8[4096]{0}', space=vmem, size = 0x1000, scoped, tag = 'input window, operand 0, single buffered']
    #allocation3 [shape = 's32[1]{0}', space=sflag, size = 0x4, scoped, tag = 'scoped memory for tpu_custom_call.1']
    #allocation4 [shape = 's32[1]{0}', space=sflag, size = 0x4, scoped, tag = 'scoped memory for tpu_custom_call.1']
    #allocation5 [shape = 'u8[4096]{0}', space=vmem, size = 0x1000, scoped, tag = 'output window, operand 0, single buffered']
    %14 = vsyncpa [#allocation3], 0
    %15 = vsyncpa [#allocation4], 0
    // Predicated region
    $region2: #{tpu_custom_call.1} parent=1 // pred_check
      _
    $region3: #{tpu_custom_call.1} parent=1 // pred_check_branch
      %17 = sbr.rel (0) target = $region5
    $region4: #{tpu_custom_call.1} parent=1 // pred_region
      %19 = vsyncadd [#allocation3], 0
      %s21 = sshll.u32 %s0, 4
      %s22 = int_to_ptr.hbm [resolvable:$true] %s21
      %s23 = sshll.u32 [#allocation2], 4
      %s24 = int_to_ptr.vmem [resolvable:$true] %s23
      %26 = dma.hbm_to_vmem [thread:$0]  %s22, 128, %s24, [#allocation3]
    $region5: #{tpu_custom_call.1} parent=1 // pred_fallthru
      _
    // Predicated region
    $region6: #{tpu_custom_call.1} parent=1 // pred_check
      _
    $region7: #{tpu_custom_call.1} parent=1 // pred_check_branch
      %28 = sbr.rel (0) target = $region9
    $region8: #{tpu_custom_call.1} parent=1 // pred_region
      _
    $region9: #{tpu_custom_call.1} parent=1 // pred_fallthru
      _
    // Predicated region
    $region10: #{tpu_custom_call.1} parent=1 // pred_check
      _
    $region11: #{tpu_custom_call.1} parent=1 // pred_check_branch
      %30 = sbr.rel (0) target = $region13
    $region12: #{tpu_custom_call.1} parent=1 // pred_region
      _
    $region13: #{tpu_custom_call.1} parent=1 // pred_fallthru
      _
    // Predicated region
    $region14: #{tpu_custom_call.1} parent=1 // pred_check
      _
    $region15: #{tpu_custom_call.1} parent=1 // pred_check_branch
      %32 = sbr.rel (0) target = $region17
    $region16: #{tpu_custom_call.1} parent=1 // pred_region
      _
    $region17: #{tpu_custom_call.1} parent=1 // pred_fallthru
      _
    // Predicated region
    $region18: #{tpu_custom_call.1} parent=1 // pred_check
      _
    $region19: #{tpu_custom_call.1} parent=1 // pred_check_branch
      %34 = sbr.rel (0) target = $region21
    $region20: #{tpu_custom_call.1} parent=1 // pred_region
      _
    $region21: #{tpu_custom_call.1} parent=1 // pred_fallthru
      _
    // Predicated region
    $region22: #{tpu_custom_call.1} parent=1 // pred_check
      _
    $region23: #{tpu_custom_call.1} parent=1 // pred_check_branch
      %36 = sbr.rel (0) target = $region25
    $region24: #{tpu_custom_call.1} parent=1 // pred_region
      _
    $region25: #{tpu_custom_call.1} parent=1 // pred_fallthru
      _
    // Predicated region
    $region26: #{tpu_custom_call.1} parent=1 // pred_check
      _
    $region27: #{tpu_custom_call.1} parent=1 // pred_check_branch
      %38 = sbr.rel (0) target = $region29
    $region28: #{tpu_custom_call.1} parent=1 // pred_region
      _
    $region29: #{tpu_custom_call.1} parent=1 // pred_fallthru
      _
    // Predicated region
    $region30: #{tpu_custom_call.1} parent=1 // pred_check
      _
    $region31: #{tpu_custom_call.1} parent=1 // pred_check_branch
      %40 = sbr.rel (0) target = $region33
    $region32: #{tpu_custom_call.1} parent=1 // pred_region
      _
    $region33: #{tpu_custom_call.1} parent=1 // pred_fallthru
      _
    // Predicated region
    $region34: #{tpu_custom_call.1} parent=1 // pred_check
      _
    $region35: #{tpu_custom_call.1} parent=1 // pred_check_branch
      %42 = sbr.rel (0) target = $region37
    $region36: #{tpu_custom_call.1} parent=1 // pred_region
      _
    $region37: #{tpu_custom_call.1} parent=1 // pred_fallthru
      _
    // Predicated region
    $region38: #{tpu_custom_call.1} parent=1 // pred_check
      _
    $region39: #{tpu_custom_call.1} parent=1 // pred_check_branch
      %44 = sbr.rel (0) target = $region41
    $region40: #{tpu_custom_call.1} parent=1 // pred_region
      %46 = dma.done [#allocation3], 128
    $region41: #{tpu_custom_call.1} parent=1 // pred_fallthru
      _
    %v47 = vld [vmem:[#allocation2] sm:$0xff]
    %v48 = vld [vmem:[%s1] sm:$0xff]
    %v49 = vld [vmem:[%s1 + $0x8] sm:$0xff]
    %v50 = vld [vmem:[%s1 + $0x10] sm:$0xff]
    %v51 = vld [vmem:[%s1 + $0x18] sm:$0xff]
    %vm52 = vcmask 261120
    %v54 = vsel %vm52, %v47, 0
    %56 = vmatpush.msra.mxu0 0.0
    %57 = vmatpush.msra.mxu0 0.0
    %58 = vmatpush.msra.mxu0 0.0
    %59 = vmatpush.msra.mxu0 0.0
    %60 = vmatpush.msra.mxu0 0.0
    %61 = vmatpush.msra.mxu0 0.0
    %62 = vmatpush.msra.mxu0 0.0
    %63 = vmatpush.msra.mxu0 0.0
    %64 = vmatpush.msra.mxu0 0.0
    %65 = vmatpush.msra.mxu0 0.0
    %66 = vmatpush.msra.mxu0 0.0
    %67 = vmatpush.msra.mxu0 0.0
    %68 = vmatpush.msra.mxu0 %v51
    %69 = vmatpush.msra.mxu0 %v50
    %70 = vmatpush.msra.mxu0 %v49
    %71 = vmatpush.msra.mxu0 %v48
    %72 = vmatmul.f32.gmra.mxu0 %v54
    %v73 = vpop.f32.mrf.mxu0
    %v74 = vadd.f32 0.0, %v73
    %75 = vdwg.mxu0
    %vm76 = vcmask 523264
    %v77 = vsel %vm76, %v74, 0.0
    %v78 = vrot.slane %v77, 4
    %v79 = vadd.f32 %v77, %v78
    %v80 = vrot.slane %v79, 2
    %v81 = vadd.f32 %v79, %v80
    %v82 = vrot.slane %v81, 1
    %v83 = vadd.f32 %v81, %v82
    %v84 = vrcp.pop 8.0
    %v85 = vmul.f32 8.0, %v84
    %v86 = vsub.f32 1.0, %v85
    %v87 = vmul.f32 %v84, %v86
    %v88 = vadd.f32 %v84, %v87
    %vm89 = vweird.f32 %v84
    %v90 = vsel %vm89, %v84, %v88
    %v91 = vmul.f32 %v83, %v90
    %v92 = vsub.f32 %v74, %v91
    %v93 = vmul.f32 %v92, %v92
    %v94 = vsel %vm76, %v93, 0.0
    %v95 = vrot.slane %v94, 4
    %v96 = vadd.f32 %v94, %v95
    %v97 = vrot.slane %v96, 2
    %v98 = vadd.f32 %v96, %v97
    %v99 = vrot.slane %v98, 1
    %v100 = vadd.f32 %v98, %v99
    %v101 = vmul.f32 %v100, %v90
    %v102 = vld [vmem:[%s2] sm:$0x1]
    %v103 = vadd.f32 %v101, 1e-05
    %v104 = vrsqrt.pop %v103
    %v105 = vmul.f32 %v104, %v103
    %v106 = vmul.f32 %v105, %v104
    %v107 = vmul.f32 0.5, %v106
    %v108 = vsub.f32 1.5, %v107
    %v109 = vmul.f32 %v104, %v108
    %vm110 = vweird.f32 %v103
    %vm111 = vweird.f32 %v104
    %vm112 = vmor %vm110, %vm111
    %v113 = vsel %vm112, %v104, %v109
    %v114 = vmul.f32 %v102, %v113
    %v116 = vperm.slane %v114, 0
    %v118 = vmul.f32 %v92, %v116
    %v119 = vld [vmem:[%s3] sm:$0x1]
    %v121 = vperm.slane %v119, 0
    %v123 = vadd.f32 %v118, %v121
    %v124 = vmax.f32 %v123, 0.0
    %v125 = vld [vmem:[%s4] sm:$0xff]
    %v126 = vld [vmem:[%s4 + $0x8] sm:$0xff]
    %v127 = vld [vmem:[%s4 + $0x10] sm:$0xff]
    %v128 = vld [vmem:[%s4 + $0x18] sm:$0xff]
    %v129 = vld [vmem:[%s4 + $0x20] sm:$0xff]
    %v130 = vld [vmem:[%s4 + $0x28] sm:$0xff]
    %v131 = vld [vmem:[%s4 + $0x30] sm:$0xff]
    %v132 = vld [vmem:[%s4 + $0x38] sm:$0xff]
    %v134 = vsel %vm76, %v124, 0
    %136 = vmatpush.msra.mxu0 0.0
    %137 = vmatpush.msra.mxu0 0.0
    %138 = vmatpush.msra.mxu0 0.0
    %139 = vmatpush.msra.mxu0 0.0
    %140 = vmatpush.msra.mxu0 0.0
    %141 = vmatpush.msra.mxu0 0.0
    %142 = vmatpush.msra.mxu0 0.0
    %143 = vmatpush.msra.mxu0 0.0
    %144 = vmatpush.msra.mxu0 %v132
    %145 = vmatpush.msra.mxu0 %v131
    %146 = vmatpush.msra.mxu0 %v130
    %147 = vmatpush.msra.mxu0 %v129
    %148 = vmatpush.msra.mxu0 %v128
    %149 = vmatpush.msra.mxu0 %v127
    %150 = vmatpush.msra.mxu0 %v126
    %151 = vmatpush.msra.mxu0 %v125
    %152 = vmatmul.f32.gmra.mxu0 %v134
    %v153 = vpop.f32.mrf.mxu0
    %v154 = vadd.f32 0.0, %v153
    %155 = vdwg.mxu0
    %v156 = vsel %vm76, %v154, 0.0
    %v157 = vrot.slane %v156, 4
    %v158 = vadd.f32 %v156, %v157
    %v159 = vrot.slane %v158, 2
    %v160 = vadd.f32 %v158, %v159
    %v161 = vrot.slane %v160, 1
    %v162 = vadd.f32 %v160, %v161
    %v163 = vmul.f32 %v162, %v90
    %v164 = vsub.f32 %v154, %v163
    %v165 = vmul.f32 %v164, %v164
    %v166 = vsel %vm76, %v165, 0.0
    %v167 = vrot.slane %v166, 4
    %v168 = vadd.f32 %v166, %v167
    %v169 = vrot.slane %v168, 2
    %v170 = vadd.f32 %v168, %v169
    %v171 = vrot.slane %v170, 1
    %v172 = vadd.f32 %v170, %v171
    %v173 = vmul.f32 %v172, %v90
    %v174 = vld [vmem:[%s5] sm:$0x1]
    %v175 = vadd.f32 %v173, 1e-05
    %v176 = vrsqrt.pop %v175
    %v177 = vmul.f32 %v176, %v175
    %v178 = vmul.f32 %v177, %v176
    %v179 = vmul.f32 0.5, %v178
    %v180 = vsub.f32 1.5, %v179
    %v181 = vmul.f32 %v176, %v180
    %vm182 = vweird.f32 %v175
    %vm183 = vweird.f32 %v176
    %vm184 = vmor %vm182, %vm183
    %v185 = vsel %vm184, %v176, %v181
    %v186 = vmul.f32 %v174, %v185
    %v188 = vperm.slane %v186, 0
    %v190 = vmul.f32 %v164, %v188
    %v191 = vld [vmem:[%s6] sm:$0x1]
    %v193 = vperm.slane %v191, 0
    %v195 = vadd.f32 %v190, %v193
    %v196 = vmax.f32 %v195, 0.0
    %v197 = vld [vmem:[%s7] sm:$0xff]
    %v198 = vld [vmem:[%s7 + $0x8] sm:$0xff]
    %v199 = vld [vmem:[%s7 + $0x10] sm:$0xff]
    %v200 = vld [vmem:[%s7 + $0x18] sm:$0xff]
    %v201 = vld [vmem:[%s7 + $0x20] sm:$0xff]
    %v202 = vld [vmem:[%s7 + $0x28] sm:$0xff]
    %v203 = vld [vmem:[%s7 + $0x30] sm:$0xff]
    %v204 = vld [vmem:[%s7 + $0x38] sm:$0xff]
    %v205 = vld [vmem:[%s8] sm:$0x1]
    %v207 = vperm.slane %v205, 0
    %v210 = vsel %vm76, %v196, 0
    %212 = vmatpush.msra.mxu0 0.0
    %213 = vmatpush.msra.mxu0 0.0
    %214 = vmatpush.msra.mxu0 0.0
    %215 = vmatpush.msra.mxu0 0.0
    %216 = vmatpush.msra.mxu0 0.0
    %217 = vmatpush.msra.mxu0 0.0
    %218 = vmatpush.msra.mxu0 0.0
    %219 = vmatpush.msra.mxu0 0.0
    %220 = vmatpush.msra.mxu0 %v204
    %221 = vmatpush.msra.mxu0 %v203
    %222 = vmatpush.msra.mxu0 %v202
    %223 = vmatpush.msra.mxu0 %v201
    %224 = vmatpush.msra.mxu0 %v200
    %225 = vmatpush.msra.mxu0 %v199
    %226 = vmatpush.msra.mxu0 %v198
    %227 = vmatpush.msra.mxu0 %v197
    %228 = vmatmul.f32.gmra.mxu0 %v210
    %v229 = vpop.f32.mrf.mxu0
    %v230 = vadd.f32 %v207, %v229
    %231 = vdwg.mxu0
    %232 = vst.msk [vmem:[#allocation5] sm:$0xff] %vm52, %v230
    // Predicated region
    $region42: #{tpu_custom_call.1} parent=1 // pred_check
      _
    $region43: #{tpu_custom_call.1} parent=1 // pred_check_branch
      %234 = sbr.rel (0) target = $region45
    $region44: #{tpu_custom_call.1} parent=1 // pred_region
      %236 = vsyncadd [#allocation4], 0
      %s238 = sshll.u32 [#allocation5], 4
      %s239 = int_to_ptr.vmem [resolvable:$true] %s238
      %s240 = sshll.u32 %s9, 4
      %s241 = int_to_ptr.hbm [resolvable:$true] %s240
      %243 = dma.vmem_to_hbm [thread:$0]  %s239, 128, %s241, [#allocation4]
    $region45: #{tpu_custom_call.1} parent=1 // pred_fallthru
      _
    // Predicated region
    $region46: #{tpu_custom_call.1} parent=1 // pred_check
      _
    $region47: #{tpu_custom_call.1} parent=1 // pred_check_branch
      %245 = sbr.rel (0) target = $region49
    $region48: #{tpu_custom_call.1} parent=1 // pred_region
      %247 = dma.done [#allocation4], 128
    $region49: #{tpu_custom_call.1} parent=1 // pred_fallthru
      _
    %248 = vsyncpa [#allocation3], 1
    %249 = vsyncpa [#allocation4], 1

</llo_original>
